<compile_context>
chip_gen: v7x
topology: tpu7x:2x2x1
jax: 0.10.0
libtpu: 0.0.40
codegen_flags: <defaults>
</compile_context>

<pallas_src>
import jax
import jax.numpy as jnp
from jax.experimental import pallas as pl
from jax.experimental.pallas import tpu as pltpu


_LANES = 128
_FUSED_MAX_ROWS = 2048     # in-kernel (one-hot) gather path: max table rows
_PALLAS_MIN_BATCH = 1024   # streaming path: below this, plain JAX is cheaper


def _round_up(x, m):
    return ((x + m - 1) // m) * m


def _vmem_physical_bytes():
    """Per-generation VMEM capacity (128 MiB v5e/v6e, 64 MiB v7x)."""
    try:
        return int(pltpu.get_tpu_info().vmem_capacity_bytes)
    except Exception:
        return 64 << 20  # conservative (v7x-safe) fallback


def _vmem_limit(vmem_needed):
    cap = _vmem_physical_bytes()
    return int(min(cap, max(32 << 20, int(1.5 * vmem_needed))))


# ----------------------------------------------------------------------------
# Fused path: in-kernel gather (one-hot MXU matmul) + reduce.  For tables that
# fit in VMEM -- tables are DMA'd into VMEM once and stay resident.
# ----------------------------------------------------------------------------
def _bpr_fused_kernel(ut_ref, it_ref, uidx_ref, iidx_ref, jidx_ref,
                      pi_ref, pj_ref):
    # ut_ref: (F, U) table (bf16), it_ref: (F, I) table (bf16)  -- VMEM resident
    # *idx_ref: (1, Bt) int32 index tiles
    # pi_ref / pj_ref: (1, Bt) lane-dense f32 output tiles
    ut = ut_ref[...]
    it = it_ref[...]
    n_user = ut.shape[1]
    n_item = it.shape[1]
    bt = uidx_ref.shape[1]

    def onehot(idx_ref, nrows):
        rows = jax.lax.broadcasted_iota(jnp.int32, (nrows, bt), 0)
        # Exact 0/1 values; matmul gather is therefore bit-exact vs. jnp.take.
        return (rows == idx_ref[...]).astype(jnp.float32).astype(ut.dtype)

    # Gather via MXU: (F, rows) @ (rows, Bt) -> (F, Bt), accumulated in f32.
    u = jnp.dot(ut, onehot(uidx_ref, n_user), preferred_element_type=jnp.float32)
    gi = jnp.dot(it, onehot(iidx_ref, n_item), preferred_element_type=jnp.float32)
    gj = jnp.dot(it, onehot(jidx_ref, n_item), preferred_element_type=jnp.float32)

    # Sublane (factor-axis) reduction -> result is already lane-dense.
    pi_ref[...] = jnp.sum(u * gi, axis=0, keepdims=True)
    pj_ref[...] = jnp.sum(u * gj, axis=0, keepdims=True)


def _choose_fused_batch_tile(batch, max_rows, itemsize):
    # Keep each one-hot temporary (rows x tile) around ~2 MiB.
    target = (2 << 20) // max(1, max_rows * itemsize)
    tile = max(_LANES, (target // _LANES) * _LANES)
    tile = min(tile, 8192)
    tile = min(tile, _round_up(batch, _LANES))
    return tile


def bpr_predictions_fused(user_t, item_t, u_idx, i_idx, j_idx, *, batch_tile):
    """Fused gather + dot-product.  Index vectors must be padded to a multiple
    of batch_tile.  Tables are (F, rows) and must fit in VMEM."""
    F, U = user_t.shape
    _, I = item_t.shape
    B = u_idx.shape[0]
    itemsize = jnp.dtype(user_t.dtype).itemsize
    assert B % batch_tile == 0

    grid = (B // batch_tile,)
    table_u_spec = pl.BlockSpec((F, U), lambda b: (0, 0))   # constant -> resident
    table_i_spec = pl.BlockSpec((F, I), lambda b: (0, 0))
    idx_spec = pl.BlockSpec((1, batch_tile), lambda b: (0, b))
    out_spec = pl.BlockSpec((1, batch_tile), lambda b: (0, b))

    # VMEM budget: resident tables, index/output double buffers, one-hot
    # temporaries, and the in-kernel f32 gathered/product temporaries.
    vmem_needed = (
        2 * F * (U + I) * itemsize
        + 3 * 2 * batch_tile * 4
        + 2 * 2 * batch_tile * 4
        + 3 * max(U, I) * batch_tile * itemsize
        + 5 * F * batch_tile * 4
    )

    pi, pj = pl.pallas_call(
        _bpr_fused_kernel,
        out_shape=(
            jax.ShapeDtypeStruct((1, B), jnp.float32),
            jax.ShapeDtypeStruct((1, B), jnp.float32),
        ),
        grid_spec=pltpu.PrefetchScalarGridSpec(
            num_scalar_prefetch=0,
            grid=grid,
            in_specs=[table_u_spec, table_i_spec, idx_spec, idx_spec, idx_spec],
            out_specs=[out_spec, out_spec],
        ),
        compiler_params=pltpu.CompilerParams(
            dimension_semantics=("parallel",),
            vmem_limit_bytes=_vmem_limit(vmem_needed),
        ),
    )(user_t, item_t,
      u_idx.reshape(1, B), i_idx.reshape(1, B), j_idx.reshape(1, B))
    return pi[0], pj[0]


# ----------------------------------------------------------------------------
# Streaming path (fallback for tables too large for VMEM): pre-gathered (F, B)
# activations, streamed through VMEM and reduced over the factor axis.
# ----------------------------------------------------------------------------
def _bpr_stream_kernel(u_ref, ii_ref, ij_ref, pi_ref, pj_ref):
    # u_ref / ii_ref / ij_ref : (F, Bt) VMEM tiles (factor on sublanes, batch on lanes)
    # pi_ref / pj_ref         : (1, Bt) lane-dense VMEM output tiles
    u = u_ref[...].astype(jnp.float32)     # f32 compute: required on v5e, free elsewhere
    ii = ii_ref[...].astype(jnp.float32)
    ij = ij_ref[...].astype(jnp.float32)
    pi_ref[...] = jnp.sum(u * ii, axis=0, keepdims=True)
    pj_ref[...] = jnp.sum(u * ij, axis=0, keepdims=True)


def _choose_batch_tile(batch, factor_num, itemsize):
    # ~2 MiB per (F, tile) input block: per-step overhead (~0.35us) becomes
    # <10% of the DMA time on v6e/v7x, while 3 inputs x 2 buffers + the
    # in-kernel f32 temporaries still fit 64 MiB (v7x) VMEM.
    target = (2 << 20) // max(1, factor_num * itemsize)
    tile = max(_LANES, (target // _LANES) * _LANES)
    tile = min(tile, 32768)
    tile = min(tile, _round_up(batch, _LANES))
    return tile


def bpr_predictions(user_emb_t, item_i_emb_t, item_j_emb_t, *, batch_tile=None):
    """Fused (user * item).sum over the factor dim for pre-gathered (F, B)
    activations.  B must be a multiple of batch_tile.  Returns two (B,) f32."""
    F, B = user_emb_t.shape
    itemsize = jnp.dtype(user_emb_t.dtype).itemsize
    if batch_tile is None:
        batch_tile = _choose_batch_tile(B, F, itemsize)
    assert B % batch_tile == 0, (
        f"batch ({B}) must be a multiple of batch_tile ({batch_tile})")

    grid = (B // batch_tile,)
    in_spec = pl.BlockSpec((F, batch_tile), lambda b: (0, b))
    out_spec = pl.BlockSpec((1, batch_tile), lambda b: (0, b))

    # bf16 pipeline buffers + output buffers + in-kernel f32 upcast/product temps.
    vmem_needed = (3 * 2 * F * batch_tile * itemsize
                   + 2 * 2 * batch_tile * 4
                   + 6 * F * batch_tile * 4)

    pi, pj = pl.pallas_call(
        _bpr_stream_kernel,
        out_shape=(
            jax.ShapeDtypeStruct((1, B), jnp.float32),
            jax.ShapeDtypeStruct((1, B), jnp.float32),
        ),
        grid_spec=pltpu.PrefetchScalarGridSpec(
            num_scalar_prefetch=0,
            grid=grid,
            in_specs=[in_spec, in_spec, in_spec],
            out_specs=[out_spec, out_spec],
        ),
        compiler_params=pltpu.CompilerParams(
            dimension_semantics=("parallel",),
            vmem_limit_bytes=_vmem_limit(vmem_needed),
        ),
    )(user_emb_t, item_i_emb_t, item_j_emb_t)
    return pi[0], pj[0]


# ----------------------------------------------------------------------------
# Module
# ----------------------------------------------------------------------------
class BPRM:
    """JAX/Pallas re-implementation of the PyTorch BPRM module (forward only).

    Tables are stored transposed, (factor_num, num_rows), in bfloat16 so the
    kernels see lane-dense (F, B) activations; all arithmetic is f32.
    NOTE: weights ported from a PyTorch checkpoint must be transposed.
    """

    def __init__(self, user_num, item_num, factor_num, key, dtype=jnp.bfloat16):
        ku, ki = jax.random.split(key)
        self.user_num, self.item_num, self.factor_num = user_num, item_num, factor_num
        # nn.init.normal_(..., std=0.01); iid entries, so the transposed layout
        # is statistically equivalent.
        self.embed_user_t = (0.01 * jax.random.normal(
            ku, (factor_num, user_num), dtype=jnp.float32)).astype(dtype)
        self.embed_item_t = (0.01 * jax.random.normal(
            ki, (factor_num, item_num), dtype=jnp.float32)).astype(dtype)

    def __call__(self, user, item_i, item_j, *, batch_tile=None, use_fused=None):
        B = user.shape[0]
        itemsize = jnp.dtype(self.embed_user_t.dtype).itemsize
        max_rows = max(self.user_num, self.item_num)
        if use_fused is None:
            use_fused = max_rows <= _FUSED_MAX_ROWS

        if use_fused:
            # Gather happens inside the kernel -> no HBM round trip of (F, B)
            # activations.  Pad the index vectors (index 0 is a valid row).
            tile = (batch_tile if batch_tile is not None else
                    _choose_fused_batch_tile(B, max_rows, itemsize))
            B_pad = _round_up(B, tile)
            pad = B_pad - B
            u_idx = jnp.pad(user.astype(jnp.int32), (0, pad))
            i_idx = jnp.pad(item_i.astype(jnp.int32), (0, pad))
            j_idx = jnp.pad(item_j.astype(jnp.int32), (0, pad))
            pred_i, pred_j = bpr_predictions_fused(
                self.embed_user_t, self.embed_item_t,
                u_idx, i_idx, j_idx, batch_tile=tile)
            return pred_i[:B], pred_j[:B]

        # ---- large-table fallback: external XLA gather + streaming reduce ----
        if batch_tile is None and B < _PALLAS_MIN_BATCH:
            # Tiny batch: launch + per-step overhead dwarfs the work.
            u = jnp.take(self.embed_user_t, user, axis=1).astype(jnp.float32)
            ii = jnp.take(self.embed_item_t, item_i, axis=1).astype(jnp.float32)
            ij = jnp.take(self.embed_item_t, item_j, axis=1).astype(jnp.float32)
            return jnp.sum(u * ii, axis=0), jnp.sum(u * ij, axis=0)

        tile = (batch_tile if batch_tile is not None else
                _choose_batch_tile(B, self.factor_num, itemsize))
        B_pad = _round_up(B, tile)
        pad = B_pad - B
        user_p = jnp.pad(user, (0, pad))
        item_i_p = jnp.pad(item_i, (0, pad))
        item_j_p = jnp.pad(item_j, (0, pad))
        # TODO(synk): for tables too large for VMEM, replace this external XLA
        # gather with a per-tile in-kernel DMA gather driven by scalar-prefetched
        # indices (avoids the extra HBM round trip of the activations).
        u_t = jnp.take(self.embed_user_t, user_p, axis=1)     # (F, B_pad)
        ii_t = jnp.take(self.embed_item_t, item_i_p, axis=1)  # (F, B_pad)
        ij_t = jnp.take(self.embed_item_t, item_j_p, axis=1)  # (F, B_pad)
        pred_i, pred_j = bpr_predictions(u_t, ii_t, ij_t, batch_tile=tile)
        return pred_i[:B], pred_j[:B]


if __name__ == "__main__":
    key = jax.random.PRNGKey(0)
    k_model, k_u, k_i, k_j = jax.random.split(key, 4)

    user_num, item_num, factor_num = 64, 128, 32
    batch = 1000  # deliberately NOT a tile multiple -> exercises padding

    model = BPRM(user_num, item_num, factor_num, k_model)

    user = jax.random.randint(k_u, (batch,), 0, user_num, dtype=jnp.int32)
    item_i = jax.random.randint(k_i, (batch,), 0, item_num, dtype=jnp.int32)
    item_j = jax.random.randint(k_j, (batch,), 0, item_num, dtype=jnp.int32)

    # Pure-JAX reference (bf16 storage, f32 compute -- same as the kernels).
    u = model.embed_user_t[:, user].astype(jnp.float32)
    ii = model.embed_item_t[:, item_i].astype(jnp.float32)
    ij = model.embed_item_t[:, item_j].astype(jnp.float32)
    ref_i = jnp.sum(u * ii, axis=0)
    ref_j = jnp.sum(u * ij, axis=0)

    # 1) Fused path: in-kernel gather + reduce (tables resident in VMEM).
    #    batch_tile=256 -> padded batch 1024, 4-step parallel grid.
    pred_i, pred_j = model(user, item_i, item_j, batch_tile=256)
    jax.block_until_ready((pred_i, pred_j))
    assert pred_i.shape == (batch,) and pred_j.shape == (batch,)
    assert jnp.allclose(pred_i, ref_i, atol=1e-6, rtol=1e-5)
    assert jnp.allclose(pred_j, ref_j, atol=1e-6, rtol=1e-5)

    # 2) Streaming (large-table fallback) path, forced, for coverage.
    pred_i2, pred_j2 = model(user, item_i, item_j, batch_tile=256, use_fused=False)
    jax.block_until_ready((pred_i2, pred_j2))
    assert jnp.allclose(pred_i2, ref_i, atol=1e-6, rtol=1e-5)
    assert jnp.allclose(pred_j2, ref_j, atol=1e-6, rtol=1e-5)

    print("KERNEL_OK")
</pallas_src>

<mosaic_0001>
module attributes {stable_mosaic.version = 11 : i64} {
  func.func @_bpr_fused_kernel(%arg0: i32, %arg1: memref<32x64xbf16, #tpu.memory_space<vmem>>, %arg2: memref<32x128xbf16, #tpu.memory_space<vmem>>, %arg3: memref<1x256xi32, #tpu.memory_space<vmem>>, %arg4: memref<1x256xi32, #tpu.memory_space<vmem>>, %arg5: memref<1x256xi32, #tpu.memory_space<vmem>>, %arg6: memref<1x256xf32, #tpu.memory_space<vmem>>, %arg7: memref<1x256xf32, #tpu.memory_space<vmem>>) attributes {dimension_semantics = [#tpu.dimension_semantics<parallel>], iteration_bounds = array<i64: 4>, scalar_prefetch = 0 : i64, scratch_operands = 0 : i64, tpu.core_type = #tpu.core_type<tc>, window_params = [{pipeline_mode = #tpu.pipeline_mode<synchronous>, transform_indices = @transform_0, window_bounds = array<i64: 32, 64>}, {pipeline_mode = #tpu.pipeline_mode<synchronous>, transform_indices = @transform_1, window_bounds = array<i64: 32, 128>}, {transform_indices = @transform_2, window_bounds = array<i64: 1, 256>}, {transform_indices = @transform_3, window_bounds = array<i64: 1, 256>}, {transform_indices = @transform_4, window_bounds = array<i64: 1, 256>}, {transform_indices = @transform_5, window_bounds = array<i64: 1, 256>}, {transform_indices = @transform_6, window_bounds = array<i64: 1, 256>}]} {
    %c0 = arith.constant 0 : index
    %c0_0 = arith.constant 0 : index
    %0 = vector.load %arg1[%c0, %c0_0] : memref<32x64xbf16, #tpu.memory_space<vmem>>, vector<32x64xbf16>
    %c0_1 = arith.constant 0 : index
    %c0_2 = arith.constant 0 : index
    %1 = vector.load %arg2[%c0_1, %c0_2] : memref<32x128xbf16, #tpu.memory_space<vmem>>, vector<32x128xbf16>
    %2 = tpu.iota {dimensions = array<i32: 0>} : vector<64x256xi32>
    %c0_3 = arith.constant 0 : index
    %c0_4 = arith.constant 0 : index
    %3 = vector.load %arg3[%c0_3, %c0_4] : memref<1x256xi32, #tpu.memory_space<vmem>>, vector<1x256xi32>
    %4 = vector.broadcast %3 : vector<1x256xi32> to vector<64x256xi32>
    %5 = arith.cmpi eq, %2, %4 : vector<64x256xi32>
    %6 = arith.extui %5 : vector<64x256xi1> to vector<64x256xi32>
    %7 = arith.sitofp %6 : vector<64x256xi32> to vector<64x256xf32>
    %8 = arith.truncf %7 : vector<64x256xf32> to vector<64x256xbf16>
    %cst = arith.constant dense<0.000000e+00> : vector<32x256xf32>
    %9 = tpu.matmul %0, %8, %cst {dimension_numbers = #tpu.dot_dimension_numbers<[1], [0], [0], [1], [0, 0, 1, 1], [], []>} : vector<32x64xbf16>, vector<64x256xbf16>, vector<32x256xf32> -> vector<32x256xf32>
    %10 = tpu.iota {dimensions = array<i32: 0>} : vector<128x256xi32>
    %c0_5 = arith.constant 0 : index
    %c0_6 = arith.constant 0 : index
    %11 = vector.load %arg4[%c0_5, %c0_6] : memref<1x256xi32, #tpu.memory_space<vmem>>, vector<1x256xi32>
    %12 = vector.broadcast %11 : vector<1x256xi32> to vector<128x256xi32>
    %13 = arith.cmpi eq, %10, %12 : vector<128x256xi32>
    %14 = arith.extui %13 : vector<128x256xi1> to vector<128x256xi32>
    %15 = arith.sitofp %14 : vector<128x256xi32> to vector<128x256xf32>
    %16 = arith.truncf %15 : vector<128x256xf32> to vector<128x256xbf16>
    %cst_7 = arith.constant dense<0.000000e+00> : vector<32x256xf32>
    %17 = tpu.matmul %1, %16, %cst_7 {dimension_numbers = #tpu.dot_dimension_numbers<[1], [0], [0], [1], [0, 0, 1, 1], [], []>} : vector<32x128xbf16>, vector<128x256xbf16>, vector<32x256xf32> -> vector<32x256xf32>
    %18 = tpu.iota {dimensions = array<i32: 0>} : vector<128x256xi32>
    %c0_8 = arith.constant 0 : index
    %c0_9 = arith.constant 0 : index
    %19 = vector.load %arg5[%c0_8, %c0_9] : memref<1x256xi32, #tpu.memory_space<vmem>>, vector<1x256xi32>
    %20 = vector.broadcast %19 : vector<1x256xi32> to vector<128x256xi32>
    %21 = arith.cmpi eq, %18, %20 : vector<128x256xi32>
    %22 = arith.extui %21 : vector<128x256xi1> to vector<128x256xi32>
    %23 = arith.sitofp %22 : vector<128x256xi32> to vector<128x256xf32>
    %24 = arith.truncf %23 : vector<128x256xf32> to vector<128x256xbf16>
    %cst_10 = arith.constant dense<0.000000e+00> : vector<32x256xf32>
    %25 = tpu.matmul %1, %24, %cst_10 {dimension_numbers = #tpu.dot_dimension_numbers<[1], [0], [0], [1], [0, 0, 1, 1], [], []>} : vector<32x128xbf16>, vector<128x256xbf16>, vector<32x256xf32> -> vector<32x256xf32>
    %26 = arith.mulf %9, %17 : vector<32x256xf32>
    %cst_11 = arith.constant dense<0.000000e+00> : vector<256xf32>
    %27 = vector.multi_reduction <add>, %26, %cst_11 [0] : vector<32x256xf32> to vector<256xf32>
    %28 = vector.shape_cast %27 : vector<256xf32> to vector<1x256xf32>
    %c0_12 = arith.constant 0 : index
    %c0_13 = arith.constant 0 : index
    %29 = vector.load %arg6[%c0_12, %c0_13] : memref<1x256xf32, #tpu.memory_space<vmem>>, vector<1x256xf32>
    tpu.vector_store %arg6[%c0_12, %c0_13], %28 {strides = array<i32>} : memref<1x256xf32, #tpu.memory_space<vmem>>, vector<1x256xf32>,
    %30 = arith.mulf %9, %25 : vector<32x256xf32>
    %cst_14 = arith.constant dense<0.000000e+00> : vector<256xf32>
    %31 = vector.multi_reduction <add>, %30, %cst_14 [0] : vector<32x256xf32> to vector<256xf32>
    %32 = vector.shape_cast %31 : vector<256xf32> to vector<1x256xf32>
    %c0_15 = arith.constant 0 : index
    %c0_16 = arith.constant 0 : index
    %33 = vector.load %arg7[%c0_15, %c0_16] : memref<1x256xf32, #tpu.memory_space<vmem>>, vector<1x256xf32>
    tpu.vector_store %arg7[%c0_15, %c0_16], %32 {strides = array<i32>} : memref<1x256xf32, #tpu.memory_space<vmem>>, vector<1x256xf32>,
    return
  }
  func.func @transform_0(%arg0: i32) -> (i32, i32) {
    %c0_i32 = arith.constant 0 : i32
    %c0_i32_0 = arith.constant 0 : i32
    %c0_i32_1 = arith.constant 0 : i32
    return %c0_i32, %c0_i32_0 : i32, i32
  }
  func.func @transform_1(%arg0: i32) -> (i32, i32) {
    %c0_i32 = arith.constant 0 : i32
    %c0_i32_0 = arith.constant 0 : i32
    %c0_i32_1 = arith.constant 0 : i32
    return %c0_i32, %c0_i32_0 : i32, i32
  }
  func.func @transform_2(%arg0: i32) -> (i32, i32) {
    %c0_i32 = arith.constant 0 : i32
    %c0_i32_0 = arith.constant 0 : i32
    return %c0_i32, %arg0 : i32, i32
  }
  func.func @transform_3(%arg0: i32) -> (i32, i32) {
    %c0_i32 = arith.constant 0 : i32
    %c0_i32_0 = arith.constant 0 : i32
    return %c0_i32, %arg0 : i32, i32
  }
  func.func @transform_4(%arg0: i32) -> (i32, i32) {
    %c0_i32 = arith.constant 0 : i32
    %c0_i32_0 = arith.constant 0 : i32
    return %c0_i32, %arg0 : i32, i32
  }
  func.func @transform_5(%arg0: i32) -> (i32, i32) {
    %c0_i32 = arith.constant 0 : i32
    %c0_i32_0 = arith.constant 0 : i32
    return %c0_i32, %arg0 : i32, i32
  }
  func.func @transform_6(%arg0: i32) -> (i32, i32) {
    %c0_i32 = arith.constant 0 : i32
    %c0_i32_0 = arith.constant 0 : i32
    return %c0_i32, %arg0 : i32, i32
  }
}

</mosaic_0001>

<llo_original>
// kernel: tpu_custom_call.1
$region0: #{tpu_custom_call.1}
  #allocation0 [shape = 'u32[]', space=smem, size = 0x4, offset = 0x4, fixed_abs, tag = 'smem constant byte address 0x4 - core index']
  #allocation1 [shape = 'u32[144,128]{1,0:T(1,128)}', space=vmem, size = 0x12000, scoped, tag = 'internal scratch']
  %s0 = inlined_call_operand.hbm [shape: bf16[32,64], index: 0, kind: input, shape index: {}]
  %s1 = inlined_call_operand.hbm [shape: bf16[32,128], index: 1, kind: input, shape index: {}]
  %s2 = inlined_call_operand.hbm [shape: s32[1,1024], index: 2, kind: input, shape index: {}]
  %s3 = inlined_call_operand.vmem [shape: s32[1,1024], index: 3, kind: input, shape index: {}]
  %s4 = inlined_call_operand.hbm [shape: s32[1,1024], index: 4, kind: input, shape index: {}]
  %s5 = inlined_call_operand.hbm [shape: f32[1,1024], index: 5, kind: output, shape index: {0}]
  %s6 = inlined_call_operand.hbm [shape: f32[1,1024], index: 6, kind: output, shape index: {1}]
  %7 = xla_tuple %s5, %s6
  %s8 = sld [smem:[#allocation0]]
  $region77: #{tpu_custom_call.1} parent=0
    _
  %s10 = ssub.s32 1, %s8
  %s11 = scalar_select 0, %s10, %s8
  $region1: #{tpu_custom_call.1} parent=0
    #allocation2 [shape = 'u8[8192]{0}', space=vmem, size = 0x2000, scoped, tag = 'input window, operand 0, single buffered']
    #allocation3 [shape = 's32[2]{0}', space=sflag, size = 0x8, scoped, tag = 'scoped memory for tpu_custom_call.1']
    #allocation4 [shape = 's32[2]{0}', space=sflag, size = 0x8, scoped, tag = 'scoped memory for tpu_custom_call.1']
    #allocation5 [shape = 'u8[8192]{0}', space=vmem, size = 0x2000, scoped, tag = 'input window, operand 1, single buffered']
    #allocation6 [shape = 's32[1]{0}', space=sflag, size = 0x4, scoped, tag = 'scoped memory for tpu_custom_call.1']
    #allocation7 [shape = 'u8[2048]{0}', space=vmem, size = 0x800, scoped, tag = 'input window, operand 2']
    #allocation8 [shape = 'u8[2048]{0}', space=vmem, size = 0x800, scoped, tag = 'input window, operand 4']
    #allocation9 [shape = 'u8[2048]{0}', space=vmem, size = 0x800, scoped, tag = 'output window, operand 0']
    #allocation10 [shape = 'u8[2048]{0}', space=vmem, size = 0x800, scoped, tag = 'output window, operand 1']
    #allocation11 [shape = 's32[2]{0}', space=sflag, size = 0x8, scoped, tag = 'scoped memory for tpu_custom_call.1']
    %12 = vsyncpa [#allocation3], 0
    %13 = vsyncpa [#allocation6], 0
    %14 = vsyncpa [#allocation4], 0
    %s15 = scalar_lea.sflag [#allocation4], 1
    %16 = vsyncpa %s15, 0
    %17 = vsyncpa [#allocation11], 0
    %s18 = scalar_lea.sflag [#allocation11], 1
    %19 = vsyncpa %s18, 0
    loop: start=0, step=1, limit=6
    $region2: #{tpu_custom_call.1} parent=1 // loop_pre_header
      _
    $region3: #{tpu_custom_call.1} parent=1 // loop_header
      %s21 = sphi 0, %s25
      %p22 = scmp.ge.s32.totalorder %s21, 6
      %s29 = sphi 0, %s29
      %s31 = sphi 0, %s29
      %s32 = sphi 0, %s31
      %s46 = sphi 0, %s32
      %s50 = sphi 0, %s50
      %s52 = sphi 0, %s50
      %s53 = sphi 0, %s52
      %s67 = sphi 0, %s53
      %s73 = sphi 0, %s75
      %s76 = sphi 0, %s73
      %s77 = sphi 0, %s76
      %s93 = sphi 0, %s77
      %s99 = sphi 0, %s101
      %s102 = sphi 0, %s99
      %s103 = sphi 0, %s102
      %s119 = sphi 0, %s103
      %s125 = sphi 0, %s127
      %s128 = sphi 0, %s125
      %s129 = sphi 0, %s128
      %s145 = sphi 0, %s129
      %s151 = sphi 0, %s153
      %s154 = sphi 0, %s151
      %s155 = sphi 0, %s154
      %s171 = sphi 0, %s155
      %s177 = sphi 0, %s179
      %s180 = sphi 0, %s177
      %s181 = sphi 0, %s180
      %s197 = sphi 0, %s181
    $region4: #{tpu_custom_call.1} parent=1 // loop_header_branch
      %24 = sbr.rel (%p22) target = $region8
    $region5: #{tpu_custom_call.1} parent=1 // loop_body
      %s26 = ssub.s32 %s21, 1
      %s27 = ssub.s32 %s21, 2
      %s28 = sadd.s32 %s21, 1
      %s30 = sadd.s32 %s29, 1
      %p33 = scmp.eq.s32.totalorder %s21, 3
      %p34 = scmp.ne.s32.totalorder %s29, %s31
      %p35 = scmp.eq.s32.totalorder %s21, 0
      %p36 = por %p34, %p35
      %p37 = scmp.ne.s32.totalorder %s29, %s31
      %p38 = scmp.eq.s32.totalorder %s26, 3
      %p39 = por %p37, %p38
      %p40 = scmp.ne.s32.totalorder %s31, %s32
      %p41 = scmp.eq.s32.totalorder %s26, 0
      %p42 = por %p40, %p41
      %p43 = scmp.ne.s32.totalorder %s31, %s32
      %p44 = scmp.eq.s32.totalorder %s27, 3
      %p45 = por %p43, %p44
      %p47 = scmp.ne.s32.totalorder %s32, %s46
      %p48 = scmp.eq.s32.totalorder %s27, 0
      %p49 = por %p47, %p48
      %s51 = sadd.s32 %s50, 1
      %p54 = scmp.eq.s32.totalorder %s21, 3
      %p55 = scmp.ne.s32.totalorder %s50, %s52
      %p56 = scmp.eq.s32.totalorder %s21, 0
      %p57 = por %p55, %p56
      %p58 = scmp.ne.s32.totalorder %s50, %s52
      %p59 = scmp.eq.s32.totalorder %s26, 3
      %p60 = por %p58, %p59
      %p61 = scmp.ne.s32.totalorder %s52, %s53
      %p62 = scmp.eq.s32.totalorder %s26, 0
      %p63 = por %p61, %p62
      %p64 = scmp.ne.s32.totalorder %s52, %s53
      %p65 = scmp.eq.s32.totalorder %s27, 3
      %p66 = por %p64, %p65
      %p68 = scmp.ne.s32.totalorder %s53, %s67
      %p69 = scmp.eq.s32.totalorder %s27, 0
      %p70 = por %p68, %p69
      %s71 = ssub.s32 %s21, %s28
      %p72 = scmp.eq.s32.totalorder %s71, 0
      %s74 = sadd.s32 %s73, 1
      %s75 = scalar_select %p72, %s73, %s74
      %p78 = pneg %p72
      %p79 = scmp.eq.s32.totalorder %s21, 3
      %p80 = por %p78, %p79
      %p81 = scmp.ne.s32.totalorder %s73, %s76
      %p82 = scmp.eq.s32.totalorder %s21, 0
      %p83 = por %p81, %p82
      %p84 = scmp.ne.s32.totalorder %s73, %s76
      %p85 = scmp.eq.s32.totalorder %s26, 3
      %p86 = por %p84, %p85
      %p87 = scmp.ne.s32.totalorder %s76, %s77
      %p88 = scmp.eq.s32.totalorder %s26, 0
      %p89 = por %p87, %p88
      %p90 = scmp.ne.s32.totalorder %s76, %s77
      %p91 = scmp.eq.s32.totalorder %s27, 3
      %p92 = por %p90, %p91
      %p94 = scmp.ne.s32.totalorder %s77, %s93
      %p95 = scmp.eq.s32.totalorder %s27, 0
      %p96 = por %p94, %p95
      %s97 = ssub.s32 %s21, %s28
      %p98 = scmp.eq.s32.totalorder %s97, 0
      %s100 = sadd.s32 %s99, 1
      %s101 = scalar_select %p98, %s99, %s100
      %p104 = pneg %p98
      %p105 = scmp.eq.s32.totalorder %s21, 3
      %p106 = por %p104, %p105
      %p107 = scmp.ne.s32.totalorder %s99, %s102
      %p108 = scmp.eq.s32.totalorder %s21, 0
      %p109 = por %p107, %p108
      %p110 = scmp.ne.s32.totalorder %s99, %s102
      %p111 = scmp.eq.s32.totalorder %s26, 3
      %p112 = por %p110, %p111
      %p113 = scmp.ne.s32.totalorder %s102, %s103
      %p114 = scmp.eq.s32.totalorder %s26, 0
      %p115 = por %p113, %p114
      %p116 = scmp.ne.s32.totalorder %s102, %s103
      %p117 = scmp.eq.s32.totalorder %s27, 3
      %p118 = por %p116, %p117
      %p120 = scmp.ne.s32.totalorder %s103, %s119
      %p121 = scmp.eq.s32.totalorder %s27, 0
      %p122 = por %p120, %p121
      %s123 = ssub.s32 %s21, %s28
      %p124 = scmp.eq.s32.totalorder %s123, 0
      %s126 = sadd.s32 %s125, 1
      %s127 = scalar_select %p124, %s125, %s126
      %p130 = pneg %p124
      %p131 = scmp.eq.s32.totalorder %s21, 3
      %p132 = por %p130, %p131
      %p133 = scmp.ne.s32.totalorder %s125, %s128
      %p134 = scmp.eq.s32.totalorder %s21, 0
      %p135 = por %p133, %p134
      %p136 = scmp.ne.s32.totalorder %s125, %s128
      %p137 = scmp.eq.s32.totalorder %s26, 3
      %p138 = por %p136, %p137
      %p139 = scmp.ne.s32.totalorder %s128, %s129
      %p140 = scmp.eq.s32.totalorder %s26, 0
      %p141 = por %p139, %p140
      %p142 = scmp.ne.s32.totalorder %s128, %s129
      %p143 = scmp.eq.s32.totalorder %s27, 3
      %p144 = por %p142, %p143
      %p146 = scmp.ne.s32.totalorder %s129, %s145
      %p147 = scmp.eq.s32.totalorder %s27, 0
      %p148 = por %p146, %p147
      %s149 = ssub.s32 %s21, %s28
      %p150 = scmp.eq.s32.totalorder %s149, 0
      %s152 = sadd.s32 %s151, 1
      %s153 = scalar_select %p150, %s151, %s152
      %p156 = pneg %p150
      %p157 = scmp.eq.s32.totalorder %s21, 3
      %p158 = por %p156, %p157
      %p159 = scmp.ne.s32.totalorder %s151, %s154
      %p160 = scmp.eq.s32.totalorder %s21, 0
      %p161 = por %p159, %p160
      %p162 = scmp.ne.s32.totalorder %s151, %s154
      %p163 = scmp.eq.s32.totalorder %s26, 3
      %p164 = por %p162, %p163
      %p165 = scmp.ne.s32.totalorder %s154, %s155
      %p166 = scmp.eq.s32.totalorder %s26, 0
      %p167 = por %p165, %p166
      %p168 = scmp.ne.s32.totalorder %s154, %s155
      %p169 = scmp.eq.s32.totalorder %s27, 3
      %p170 = por %p168, %p169
      %p172 = scmp.ne.s32.totalorder %s155, %s171
      %p173 = scmp.eq.s32.totalorder %s27, 0
      %p174 = por %p172, %p173
      %s175 = ssub.s32 %s21, %s28
      %p176 = scmp.eq.s32.totalorder %s175, 0
      %s178 = sadd.s32 %s177, 1
      %s179 = scalar_select %p176, %s177, %s178
      %p182 = pneg %p176
      %p183 = scmp.eq.s32.totalorder %s21, 3
      %p184 = por %p182, %p183
      %p185 = scmp.ne.s32.totalorder %s177, %s180
      %p186 = scmp.eq.s32.totalorder %s21, 0
      %p187 = por %p185, %p186
      %p188 = scmp.ne.s32.totalorder %s177, %s180
      %p189 = scmp.eq.s32.totalorder %s26, 3
      %p190 = por %p188, %p189
      %p191 = scmp.ne.s32.totalorder %s180, %s181
      %p192 = scmp.eq.s32.totalorder %s26, 0
      %p193 = por %p191, %p192
      %p194 = scmp.ne.s32.totalorder %s180, %s181
      %p195 = scmp.eq.s32.totalorder %s27, 3
      %p196 = por %p194, %p195
      %p198 = scmp.ne.s32.totalorder %s181, %s197
      %p199 = scmp.eq.s32.totalorder %s27, 0
      %p200 = por %p198, %p199
      %p201 = scmp.le.s32.totalorder 1, %s21
      %p202 = scmp.lt.s32.totalorder %s21, 5
      %p203 = pnand %p201, %p202
      %p204 = pneg %p203
      // Predicated region
      $region9: #{tpu_custom_call.1} parent=5 // pred_check
        _
      $region10: #{tpu_custom_call.1} parent=5 // pred_check_branch
        %206 = sbr.rel (%p203) target = $region12
      $region11: #{tpu_custom_call.1} parent=5 // pred_region
        %s207 = ssub.s32 %s21, 1
        // Predicated region
        $region13: #{tpu_custom_call.1} parent=11 // pred_check
          %p208 = pneg %p42
        $region14: #{tpu_custom_call.1} parent=11 // pred_check_branch
          %210 = sbr.rel (%p208) target = $region16
        $region15: #{tpu_custom_call.1} parent=11 // pred_region
          %s212 = ssub.s32 256, 256
          %213 = vsyncadd [#allocation3], %s212
          %s214 = sshll.u32 [#allocation2], 4
          %s215 = int_to_ptr.vmem [resolvable:$true] %s214
          %220 = dma.hbm_to_vmem [thread:$0]  %s0, 256, %s215, [#allocation3], 64, 64, 4
        $region16: #{tpu_custom_call.1} parent=11 // pred_fallthru
          _
        // Predicated region
        $region17: #{tpu_custom_call.1} parent=11 // pred_check
          %p221 = pneg %p63
        $region18: #{tpu_custom_call.1} parent=11 // pred_check_branch
          %223 = sbr.rel (%p221) target = $region20
        $region19: #{tpu_custom_call.1} parent=11 // pred_region
          %s225 = ssub.s32 256, 256
          %226 = vsyncadd [#allocation6], %s225
          %s227 = sshll.u32 [#allocation5], 4
          %s228 = int_to_ptr.vmem [resolvable:$true] %s227
          %233 = dma.hbm_to_vmem [thread:$0]  %s1, 256, %s228, [#allocation6], 64, 64, 4
        $region20: #{tpu_custom_call.1} parent=11 // pred_fallthru
          _
      $region12: #{tpu_custom_call.1} parent=5 // pred_fallthru
        _
      %p234 = scmp.lt.s32.totalorder %s21, 4
      // Predicated region
      $region21: #{tpu_custom_call.1} parent=5 // pred_check
        %p235 = pneg %p234
      $region22: #{tpu_custom_call.1} parent=5 // pred_check_branch
        %237 = sbr.rel (%p235) target = $region24
      $region23: #{tpu_custom_call.1} parent=5 // pred_region
        // Predicated region
        $region25: #{tpu_custom_call.1} parent=23 // pred_check
          %p238 = pneg %p83
        $region26: #{tpu_custom_call.1} parent=23 // pred_check_branch
          %240 = sbr.rel (%p238) target = $region28
        $region27: #{tpu_custom_call.1} parent=23 // pred_region
          %s241 = sand.u32 %s21, 1
          %s242 = scalar_lea.sflag [#allocation3], %s241
          %s243 = sand.u32 %s73, 1
          %s244 = smul.addr %s243, 2
          %s245 = scalar_lea.vmem [#allocation7], %s244
          %s246 = smul.u32 2, %s21
          %s248 = ssub.s32 32, 32
          %249 = vsyncadd %s242, %s248
          %s250 = smul.addr %s246, 16
          %s251 = scalar_lea.hbm %s2, %s250
          %s253 = sshll.u32 %s245, 4
          %s254 = int_to_ptr.vmem [resolvable:$true] %s253
          %256 = dma.hbm_to_vmem [thread:$0]  %s251, 32, %s254, %s242
        $region28: #{tpu_custom_call.1} parent=23 // pred_fallthru
          _
        // Predicated region
        $region29: #{tpu_custom_call.1} parent=23 // pred_check
          %p257 = pneg %p109
        $region30: #{tpu_custom_call.1} parent=23 // pred_check_branch
          %259 = sbr.rel (%p257) target = $region32
        $region31: #{tpu_custom_call.1} parent=23 // pred_region
          %s260 = smul.u32 2, %s21
          %p261 = scmp.lt.s32.totalorder %s260, 7
          %s262 = scalar_select %p261, %s260, 7
          %s263 = scalar_lea.vmem %s3, %s262
          %s264 = smul.u32 2, %s21
        $region32: #{tpu_custom_call.1} parent=23 // pred_fallthru
          _
        // Predicated region
        $region33: #{tpu_custom_call.1} parent=23 // pred_check
          %p265 = pneg %p135
        $region34: #{tpu_custom_call.1} parent=23 // pred_check_branch
          %267 = sbr.rel (%p265) target = $region36
        $region35: #{tpu_custom_call.1} parent=23 // pred_region
          %s268 = sand.u32 %s21, 1
          %s269 = scalar_lea.sflag [#allocation3], %s268
          %s270 = sand.u32 %s125, 1
          %s271 = smul.addr %s270, 2
          %s272 = scalar_lea.vmem [#allocation8], %s271
          %s273 = smul.u32 2, %s21
          %s275 = ssub.s32 32, 32
          %276 = vsyncadd %s269, %s275
          %s277 = smul.addr %s273, 16
          %s278 = scalar_lea.hbm %s4, %s277
          %s280 = sshll.u32 %s272, 4
          %s281 = int_to_ptr.vmem [resolvable:$true] %s280
          %283 = dma.hbm_to_vmem [thread:$0]  %s278, 32, %s281, %s269
        $region36: #{tpu_custom_call.1} parent=23 // pred_fallthru
          _
      $region24: #{tpu_custom_call.1} parent=5 // pred_fallthru
        _
      %p284 = scmp.le.s32.totalorder 1, %s21
      %p285 = scmp.lt.s32.totalorder %s21, 5
      %p286 = pnand %p284, %p285
      %p287 = pneg %p286
      // Predicated region
      $region37: #{tpu_custom_call.1} parent=5 // pred_check
        _
      $region38: #{tpu_custom_call.1} parent=5 // pred_check_branch
        %289 = sbr.rel (%p286) target = $region40
      $region39: #{tpu_custom_call.1} parent=5 // pred_region
        %s290 = ssub.s32 %s21, 1
        // Predicated region
        $region41: #{tpu_custom_call.1} parent=39 // pred_check
          %p291 = pneg %p42
        $region42: #{tpu_custom_call.1} parent=39 // pred_check_branch
          %293 = sbr.rel (%p291) target = $region44
        $region43: #{tpu_custom_call.1} parent=39 // pred_region
          %294 = dma.done [#allocation3], 256
        $region44: #{tpu_custom_call.1} parent=39 // pred_fallthru
          _
        // Predicated region
        $region45: #{tpu_custom_call.1} parent=39 // pred_check
          %p295 = pneg %p63
        $region46: #{tpu_custom_call.1} parent=39 // pred_check_branch
          %297 = sbr.rel (%p295) target = $region48
        $region47: #{tpu_custom_call.1} parent=39 // pred_region
          %298 = dma.done [#allocation6], 256
        $region48: #{tpu_custom_call.1} parent=39 // pred_fallthru
          _
        %s299 = sand.u32 %s26, 1
        %s300 = scalar_lea.sflag [#allocation3], %s299
        %s301 = sand.u32 %s76, 1
        %s302 = smul.addr %s301, 2
        %s303 = scalar_lea.vmem [#allocation7], %s302
        // Predicated region
        $region49: #{tpu_custom_call.1} parent=39 // pred_check
          %p304 = pneg %p89
        $region50: #{tpu_custom_call.1} parent=39 // pred_check_branch
          %306 = sbr.rel (%p304) target = $region52
        $region51: #{tpu_custom_call.1} parent=39 // pred_region
          %307 = dma.done %s300, 32
        $region52: #{tpu_custom_call.1} parent=39 // pred_fallthru
          _
        %s308 = sand.u32 %s26, 1
        %s309 = scalar_lea.sflag [#allocation3], %s308
        %s310 = sand.u32 %s128, 1
        %s311 = smul.addr %s310, 2
        %s312 = scalar_lea.vmem [#allocation8], %s311
        // Predicated region
        $region53: #{tpu_custom_call.1} parent=39 // pred_check
          %p313 = pneg %p141
        $region54: #{tpu_custom_call.1} parent=39 // pred_check_branch
          %315 = sbr.rel (%p313) target = $region56
        $region55: #{tpu_custom_call.1} parent=39 // pred_region
          %316 = dma.done %s309, 32
        $region56: #{tpu_custom_call.1} parent=39 // pred_fallthru
          _
        %p317 = pneg %p42
        %p318 = pneg %p39
        %p319 = pneg %p63
        %p320 = pneg %p60
        %s321 = sand.u32 %s26, 1
        %s322 = scalar_lea.sflag [#allocation3], %s321
        %s323 = sand.u32 %s76, 1
        %s324 = smul.addr %s323, 2
        %s325 = scalar_lea.vmem [#allocation7], %s324
        %p326 = pneg %p89
        %p327 = pneg %p86
        %s328 = smul.u32 2, %s26
        %p329 = scmp.lt.s32.totalorder %s328, 7
        %s330 = scalar_select %p329, %s328, 7
        %s331 = scalar_lea.vmem %s3, %s330
        %p332 = pneg %p115
        %p333 = pneg %p112
        %s334 = sand.u32 %s26, 1
        %s335 = scalar_lea.sflag [#allocation3], %s334
        %s336 = sand.u32 %s128, 1
        %s337 = smul.addr %s336, 2
        %s338 = scalar_lea.vmem [#allocation8], %s337
        %p339 = pneg %p141
        %p340 = pneg %p138
        %p341 = pneg %p167
        %p342 = pneg %p164
        %s343 = sand.u32 %s154, 1
        %s344 = scalar_lea.sflag [#allocation4], %s343
        %s345 = sand.u32 %s154, 1
        %s346 = smul.addr %s345, 2
        %s347 = scalar_lea.vmem [#allocation9], %s346
        %p348 = pneg %p193
        %p349 = pneg %p190
        %s350 = sand.u32 %s180, 1
        %s351 = scalar_lea.sflag [#allocation11], %s350
        %s352 = sand.u32 %s180, 1
        %s353 = smul.addr %s352, 2
        %s354 = scalar_lea.vmem [#allocation10], %s353
        %s355 = smul.u32 2, %s26
        %s356 = smul.u32 2, %s26
        %p357 = scmp.lt.s32.totalorder %s356, 7
        %s358 = scalar_select %p357, %s356, 7
        %s359 = scalar_lea.vmem %s3, %s358
        %s360 = smul.u32 2, %s26
        %s361 = smul.u32 2, %s26
        %s362 = smul.u32 2, %s26
        %s363 = smul.u32 2, %s26
        %v365 = vld [vmem:[#allocation2] sm:$0xf]
        %v366 = vld [vmem:[#allocation2 + $0x4] sm:$0xf]
        %v367 = vld [vmem:[#allocation2 + $0x8] sm:$0xf]
        %v368 = vld [vmem:[#allocation2 + $0xc] sm:$0xf]
        %v369 = vld [vmem:[#allocation5] sm:$0xf]
        %v370 = vld [vmem:[#allocation5 + $0x4] sm:$0xf]
        %v371 = vld [vmem:[#allocation5 + $0x8] sm:$0xf]
        %v372 = vld [vmem:[#allocation5 + $0xc] sm:$0xf]
        %v373 = vlaneseq
        %v374 = vshrl.u32 %v373, 7
        %v375 = vadd.s32 %v374, 8
        %v376 = vadd.s32 %v374, 16
        %v377 = vadd.s32 %v374, 24
        %v378 = vadd.s32 %v374, 32
        %v379 = vadd.s32 %v374, 40
        %v380 = vadd.s32 %v374, 48
        %v381 = vadd.s32 %v374, 56
        %v382 = vld [vmem:[%s303] sm:$0x3]
        %v383 = vlaneseq
        %v384 = vshrl.u32 %v383, 7
        %v385 = vsub.s32 0, %v384
        %v386 = vrot.slane %v382, %v385
        %v387 = vlaneseq
        %v388 = vshrl.u32 %v387, 7
        %v389 = vsub.s32 1, %v388
        %v390 = vrot.slane %v382, %v389
        %vm391 = vcmp.eq.s32.totalorder %v374, %v386
        %vm392 = vcmp.eq.s32.totalorder %v374, %v390
        %vm393 = vcmp.eq.s32.totalorder %v375, %v386
        %vm394 = vcmp.eq.s32.totalorder %v375, %v390
        %vm395 = vcmp.eq.s32.totalorder %v376, %v386
        %vm396 = vcmp.eq.s32.totalorder %v376, %v390
        %vm397 = vcmp.eq.s32.totalorder %v377, %v386
        %vm398 = vcmp.eq.s32.totalorder %v377, %v390
        %vm399 = vcmp.eq.s32.totalorder %v378, %v386
        %vm400 = vcmp.eq.s32.totalorder %v378, %v390
        %vm401 = vcmp.eq.s32.totalorder %v379, %v386
        %vm402 = vcmp.eq.s32.totalorder %v379, %v390
        %vm403 = vcmp.eq.s32.totalorder %v380, %v386
        %vm404 = vcmp.eq.s32.totalorder %v380, %v390
        %vm405 = vcmp.eq.s32.totalorder %v381, %v386
        %vm406 = vcmp.eq.s32.totalorder %v381, %v390
        %v407 = vsel %vm391, 1, 0
        %v408 = vsel %vm392, 1, 0
        %v409 = vsel %vm393, 1, 0
        %v410 = vsel %vm394, 1, 0
        %v411 = vsel %vm395, 1, 0
        %v412 = vsel %vm396, 1, 0
        %v413 = vsel %vm397, 1, 0
        %v414 = vsel %vm398, 1, 0
        %v415 = vsel %vm399, 1, 0
        %v416 = vsel %vm400, 1, 0
        %v417 = vsel %vm401, 1, 0
        %v418 = vsel %vm402, 1, 0
        %v419 = vsel %vm403, 1, 0
        %v420 = vsel %vm404, 1, 0
        %v421 = vsel %vm405, 1, 0
        %v422 = vsel %vm406, 1, 0
        %v423 = vcvt.s32.f32 %v407
        %v424 = vcvt.s32.f32 %v408
        %v425 = vcvt.s32.f32 %v409
        %v426 = vcvt.s32.f32 %v410
        %v427 = vcvt.s32.f32 %v411
        %v428 = vcvt.s32.f32 %v412
        %v429 = vcvt.s32.f32 %v413
        %v430 = vcvt.s32.f32 %v414
        %v431 = vcvt.s32.f32 %v415
        %v432 = vcvt.s32.f32 %v416
        %v433 = vcvt.s32.f32 %v417
        %v434 = vcvt.s32.f32 %v418
        %v435 = vcvt.s32.f32 %v419
        %v436 = vcvt.s32.f32 %v420
        %v437 = vcvt.s32.f32 %v421
        %v438 = vcvt.s32.f32 %v422
        %v439 = vpack.c.bf16 %v425, %v423
        %v440 = vpack.c.bf16 %v426, %v424
        %v441 = vpack.c.bf16 %v429, %v427
        %v442 = vpack.c.bf16 %v430, %v428
        %v443 = vpack.c.bf16 %v433, %v431
        %v444 = vpack.c.bf16 %v434, %v432
        %v445 = vpack.c.bf16 %v437, %v435
        %v446 = vpack.c.bf16 %v438, %v436
        %v451 = vunpack.c.l.b16 %v365
        %v452 = vunpack.c.l.b16 %v366
        %v453 = vunpack.c.l.b16 %v367
        %v454 = vunpack.c.l.b16 %v368
        %v455 = vpack.c.b16 %v452, %v451
        %v456 = vpack.c.b16 %v454, %v453
        %vm457 = vcmask 523264
        %v459 = vsel %vm457, %v455, 0
        %v462 = vsel %vm457, %v456, 0
        %464 = vmatprep.subr.bf16.mxu0 %v440
        %465 = vmatpush1.bf16.msra.mxu0 %v439
        %466 = vmatprep.subr.bf16.mxu0 %v442
        %467 = vmatpush1.bf16.msra.mxu0 %v441
        %468 = vmatprep.subr.bf16.mxu0 %v444
        %469 = vmatpush1.bf16.msra.mxu0 %v443
        %470 = vmatprep.subr.bf16.mxu0 %v446
        %471 = vmatpush1.bf16.msra.mxu0 %v445
        %472 = vmatprep.subr.bf16.mxu0 0
        %473 = vmatpush1.bf16.msra.mxu0 0
        %474 = vmatprep.subr.bf16.mxu0 0
        %475 = vmatpush1.bf16.msra.mxu0 0
        %476 = vmatprep.subr.bf16.mxu0 0
        %477 = vmatpush1.bf16.msra.mxu0 0
        %478 = vmatprep.subr.bf16.mxu0 0
        %479 = vmatpush1.bf16.msra.mxu0 0
        %480 = vmatprep.subr.bf16.mxu0 0
        %481 = vmatpush1.bf16.msra.mxu0 0
        %482 = vmatprep.subr.bf16.mxu0 0
        %483 = vmatpush1.bf16.msra.mxu0 0
        %484 = vmatprep.subr.bf16.mxu0 0
        %485 = vmatpush1.bf16.msra.mxu0 0
        %486 = vmatprep.subr.bf16.mxu0 0
        %487 = vmatpush1.bf16.msra.mxu0 0
        %488 = vmatprep.subr.bf16.mxu0 0
        %489 = vmatpush1.bf16.msra.mxu0 0
        %490 = vmatprep.subr.bf16.mxu0 0
        %491 = vmatpush1.bf16.msra.mxu0 0
        %492 = vmatprep.subr.bf16.mxu0 0
        %493 = vmatpush1.bf16.msra.mxu0 0
        %494 = vmatprep.subr.bf16.mxu0 0
        %495 = vmatpush1.bf16.msra.mxu0 0
        %496 = vmatprep.mubr.bf16.mxu0 0
        %497 = vmatmul.mubr.bf16.gmra.mrb[0].mxu0 %v459
        %v498 = vpop.f32.mrb[0].mxu0
        %v499 = vadd.f32 0.0, %v498
        %v500 = vpop.f32.mrb[0].mxu0
        %v501 = vadd.f32 0.0, %v500
        %v502 = vpop.f32.mrb[0].mxu0
        %v503 = vadd.f32 0.0, %v502
        %v504 = vpop.f32.mrb[0].mxu0
        %v505 = vadd.f32 0.0, %v504
        %506 = vmatprep.mubr.bf16.mxu0 0
        %507 = vmatmul.mubr.bf16.gmra.mrb[0].mxu0 %v462
        %v508 = vpop.f32.mrb[0].mxu0
        %v509 = vadd.f32 0.0, %v508
        %v510 = vpop.f32.mrb[0].mxu0
        %v511 = vadd.f32 0.0, %v510
        %v512 = vpop.f32.mrb[0].mxu0
        %v513 = vadd.f32 0.0, %v512
        %v514 = vpop.f32.mrb[0].mxu0
        %v515 = vadd.f32 0.0, %v514
        %516 = vdwg.mxu0
        %v517 = vadd.s32 %v374, 64
        %v518 = vadd.s32 %v374, 72
        %v519 = vadd.s32 %v374, 80
        %v520 = vadd.s32 %v374, 88
        %v521 = vadd.s32 %v374, 96
        %v522 = vadd.s32 %v374, 104
        %v523 = vadd.s32 %v374, 112
        %v524 = vadd.s32 %v374, 120
        %v525 = vld [vmem:[%s359] sm:$0x3]
        %v526 = vlaneseq
        %v527 = vshrl.u32 %v526, 7
        %v528 = vsub.s32 0, %v527
        %v529 = vrot.slane %v525, %v528
        %v530 = vlaneseq
        %v531 = vshrl.u32 %v530, 7
        %v532 = vsub.s32 1, %v531
        %v533 = vrot.slane %v525, %v532
        %vm534 = vcmp.eq.s32.totalorder %v374, %v529
        %vm535 = vcmp.eq.s32.totalorder %v374, %v533
        %vm536 = vcmp.eq.s32.totalorder %v375, %v529
        %vm537 = vcmp.eq.s32.totalorder %v375, %v533
        %vm538 = vcmp.eq.s32.totalorder %v376, %v529
        %vm539 = vcmp.eq.s32.totalorder %v376, %v533
        %vm540 = vcmp.eq.s32.totalorder %v377, %v529
        %vm541 = vcmp.eq.s32.totalorder %v377, %v533
        %vm542 = vcmp.eq.s32.totalorder %v378, %v529
        %vm543 = vcmp.eq.s32.totalorder %v378, %v533
        %vm544 = vcmp.eq.s32.totalorder %v379, %v529
        %vm545 = vcmp.eq.s32.totalorder %v379, %v533
        %vm546 = vcmp.eq.s32.totalorder %v380, %v529
        %vm547 = vcmp.eq.s32.totalorder %v380, %v533
        %vm548 = vcmp.eq.s32.totalorder %v381, %v529
        %vm549 = vcmp.eq.s32.totalorder %v381, %v533
        %vm550 = vcmp.eq.s32.totalorder %v517, %v529
        %vm551 = vcmp.eq.s32.totalorder %v517, %v533
        %vm552 = vcmp.eq.s32.totalorder %v518, %v529
        %vm553 = vcmp.eq.s32.totalorder %v518, %v533
        %vm554 = vcmp.eq.s32.totalorder %v519, %v529
        %vm555 = vcmp.eq.s32.totalorder %v519, %v533
        %vm556 = vcmp.eq.s32.totalorder %v520, %v529
        %vm557 = vcmp.eq.s32.totalorder %v520, %v533
        %vm558 = vcmp.eq.s32.totalorder %v521, %v529
        %vm559 = vcmp.eq.s32.totalorder %v521, %v533
        %vm560 = vcmp.eq.s32.totalorder %v522, %v529
        %vm561 = vcmp.eq.s32.totalorder %v522, %v533
        %vm562 = vcmp.eq.s32.totalorder %v523, %v529
        %vm563 = vcmp.eq.s32.totalorder %v523, %v533
        %vm564 = vcmp.eq.s32.totalorder %v524, %v529
        %vm565 = vcmp.eq.s32.totalorder %v524, %v533
        %v566 = vsel %vm534, 1, 0
        %v567 = vsel %vm535, 1, 0
        %v568 = vsel %vm536, 1, 0
        %v569 = vsel %vm537, 1, 0
        %v570 = vsel %vm538, 1, 0
        %v571 = vsel %vm539, 1, 0
        %v572 = vsel %vm540, 1, 0
        %v573 = vsel %vm541, 1, 0
        %v574 = vsel %vm542, 1, 0
        %v575 = vsel %vm543, 1, 0
        %v576 = vsel %vm544, 1, 0
        %v577 = vsel %vm545, 1, 0
        %v578 = vsel %vm546, 1, 0
        %v579 = vsel %vm547, 1, 0
        %v580 = vsel %vm548, 1, 0
        %v581 = vsel %vm549, 1, 0
        %v582 = vsel %vm550, 1, 0
        %v583 = vsel %vm551, 1, 0
        %v584 = vsel %vm552, 1, 0
        %v585 = vsel %vm553, 1, 0
        %v586 = vsel %vm554, 1, 0
        %v587 = vsel %vm555, 1, 0
        %v588 = vsel %vm556, 1, 0
        %v589 = vsel %vm557, 1, 0
        %v590 = vsel %vm558, 1, 0
        %v591 = vsel %vm559, 1, 0
        %v592 = vsel %vm560, 1, 0
        %v593 = vsel %vm561, 1, 0
        %v594 = vsel %vm562, 1, 0
        %v595 = vsel %vm563, 1, 0
        %v596 = vsel %vm564, 1, 0
        %v597 = vsel %vm565, 1, 0
        %v598 = vcvt.s32.f32 %v566
        %v599 = vcvt.s32.f32 %v567
        %v600 = vcvt.s32.f32 %v568
        %v601 = vcvt.s32.f32 %v569
        %v602 = vcvt.s32.f32 %v570
        %v603 = vcvt.s32.f32 %v571
        %v604 = vcvt.s32.f32 %v572
        %v605 = vcvt.s32.f32 %v573
        %v606 = vcvt.s32.f32 %v574
        %v607 = vcvt.s32.f32 %v575
        %v608 = vcvt.s32.f32 %v576
        %v609 = vcvt.s32.f32 %v577
        %v610 = vcvt.s32.f32 %v578
        %v611 = vcvt.s32.f32 %v579
        %v612 = vcvt.s32.f32 %v580
        %v613 = vcvt.s32.f32 %v581
        %v614 = vcvt.s32.f32 %v582
        %v615 = vcvt.s32.f32 %v583
        %v616 = vcvt.s32.f32 %v584
        %v617 = vcvt.s32.f32 %v585
        %v618 = vcvt.s32.f32 %v586
        %v619 = vcvt.s32.f32 %v587
        %v620 = vcvt.s32.f32 %v588
        %v621 = vcvt.s32.f32 %v589
        %v622 = vcvt.s32.f32 %v590
        %v623 = vcvt.s32.f32 %v591
        %v624 = vcvt.s32.f32 %v592
        %v625 = vcvt.s32.f32 %v593
        %v626 = vcvt.s32.f32 %v594
        %v627 = vcvt.s32.f32 %v595
        %v628 = vcvt.s32.f32 %v596
        %v629 = vcvt.s32.f32 %v597
        %v630 = vpack.c.bf16 %v600, %v598
        %v631 = vpack.c.bf16 %v601, %v599
        %v632 = vpack.c.bf16 %v604, %v602
        %v633 = vpack.c.bf16 %v605, %v603
        %v634 = vpack.c.bf16 %v608, %v606
        %v635 = vpack.c.bf16 %v609, %v607
        %v636 = vpack.c.bf16 %v612, %v610
        %v637 = vpack.c.bf16 %v613, %v611
        %v638 = vpack.c.bf16 %v616, %v614
        %v639 = vpack.c.bf16 %v617, %v615
        %v640 = vpack.c.bf16 %v620, %v618
        %v641 = vpack.c.bf16 %v621, %v619
        %v642 = vpack.c.bf16 %v624, %v622
        %v643 = vpack.c.bf16 %v625, %v623
        %v644 = vpack.c.bf16 %v628, %v626
        %v645 = vpack.c.bf16 %v629, %v627
        %v650 = vunpack.c.l.b16 %v369
        %v651 = vunpack.c.l.b16 %v370
        %v652 = vunpack.c.l.b16 %v371
        %v653 = vunpack.c.l.b16 %v372
        %v654 = vpack.c.b16 %v651, %v650
        %v655 = vpack.c.b16 %v653, %v652
        %658 = vmatprep.subr.bf16.mxu0 %v631
        %659 = vmatpush1.bf16.msra.mxu0 %v630
        %660 = vmatprep.subr.bf16.mxu0 %v633
        %661 = vmatpush1.bf16.msra.mxu0 %v632
        %662 = vmatprep.subr.bf16.mxu0 %v635
        %663 = vmatpush1.bf16.msra.mxu0 %v634
        %664 = vmatprep.subr.bf16.mxu0 %v637
        %665 = vmatpush1.bf16.msra.mxu0 %v636
        %666 = vmatprep.subr.bf16.mxu0 %v639
        %667 = vmatpush1.bf16.msra.mxu0 %v638
        %668 = vmatprep.subr.bf16.mxu0 %v641
        %669 = vmatpush1.bf16.msra.mxu0 %v640
        %670 = vmatprep.subr.bf16.mxu0 %v643
        %671 = vmatpush1.bf16.msra.mxu0 %v642
        %672 = vmatprep.subr.bf16.mxu0 %v645
        %673 = vmatpush1.bf16.msra.mxu0 %v644
        %674 = vmatprep.subr.bf16.mxu0 0
        %675 = vmatpush1.bf16.msra.mxu0 0
        %676 = vmatprep.subr.bf16.mxu0 0
        %677 = vmatpush1.bf16.msra.mxu0 0
        %678 = vmatprep.subr.bf16.mxu0 0
        %679 = vmatpush1.bf16.msra.mxu0 0
        %680 = vmatprep.subr.bf16.mxu0 0
        %681 = vmatpush1.bf16.msra.mxu0 0
        %682 = vmatprep.subr.bf16.mxu0 0
        %683 = vmatpush1.bf16.msra.mxu0 0
        %684 = vmatprep.subr.bf16.mxu0 0
        %685 = vmatpush1.bf16.msra.mxu0 0
        %686 = vmatprep.subr.bf16.mxu0 0
        %687 = vmatpush1.bf16.msra.mxu0 0
        %688 = vmatprep.subr.bf16.mxu0 0
        %689 = vmatpush1.bf16.msra.mxu0 0
        %690 = vmatprep.mubr.bf16.mxu0 0
        %691 = vmatmul.mubr.bf16.gmra.mrb[0].mxu0 %v654
        %v692 = vpop.f32.mrb[0].mxu0
        %v693 = vadd.f32 0.0, %v692
        %v694 = vpop.f32.mrb[0].mxu0
        %v695 = vadd.f32 0.0, %v694
        %v696 = vpop.f32.mrb[0].mxu0
        %v697 = vadd.f32 0.0, %v696
        %v698 = vpop.f32.mrb[0].mxu0
        %v699 = vadd.f32 0.0, %v698
        %700 = vmatprep.mubr.bf16.mxu0 0
        %701 = vmatmul.mubr.bf16.gmra.mrb[0].mxu0 %v655
        %v702 = vpop.f32.mrb[0].mxu0
        %v703 = vadd.f32 0.0, %v702
        %v704 = vpop.f32.mrb[0].mxu0
        %v705 = vadd.f32 0.0, %v704
        %v706 = vpop.f32.mrb[0].mxu0
        %v707 = vadd.f32 0.0, %v706
        %v708 = vpop.f32.mrb[0].mxu0
        %v709 = vadd.f32 0.0, %v708
        %710 = vdwg.mxu0
        %v711 = vld [vmem:[%s312] sm:$0x3]
        %v712 = vlaneseq
        %v713 = vshrl.u32 %v712, 7
        %v714 = vsub.s32 0, %v713
        %v715 = vrot.slane %v711, %v714
        %v716 = vlaneseq
        %v717 = vshrl.u32 %v716, 7
        %v718 = vsub.s32 1, %v717
        %v719 = vrot.slane %v711, %v718
        %vm720 = vcmp.eq.s32.totalorder %v374, %v715
        %vm721 = vcmp.eq.s32.totalorder %v374, %v719
        %vm722 = vcmp.eq.s32.totalorder %v375, %v715
        %vm723 = vcmp.eq.s32.totalorder %v375, %v719
        %vm724 = vcmp.eq.s32.totalorder %v376, %v715
        %vm725 = vcmp.eq.s32.totalorder %v376, %v719
        %vm726 = vcmp.eq.s32.totalorder %v377, %v715
        %vm727 = vcmp.eq.s32.totalorder %v377, %v719
        %vm728 = vcmp.eq.s32.totalorder %v378, %v715
        %vm729 = vcmp.eq.s32.totalorder %v378, %v719
        %vm730 = vcmp.eq.s32.totalorder %v379, %v715
        %vm731 = vcmp.eq.s32.totalorder %v379, %v719
        %vm732 = vcmp.eq.s32.totalorder %v380, %v715
        %vm733 = vcmp.eq.s32.totalorder %v380, %v719
        %vm734 = vcmp.eq.s32.totalorder %v381, %v715
        %vm735 = vcmp.eq.s32.totalorder %v381, %v719
        %vm736 = vcmp.eq.s32.totalorder %v517, %v715
        %vm737 = vcmp.eq.s32.totalorder %v517, %v719
        %vm738 = vcmp.eq.s32.totalorder %v518, %v715
        %vm739 = vcmp.eq.s32.totalorder %v518, %v719
        %vm740 = vcmp.eq.s32.totalorder %v519, %v715
        %vm741 = vcmp.eq.s32.totalorder %v519, %v719
        %vm742 = vcmp.eq.s32.totalorder %v520, %v715
        %vm743 = vcmp.eq.s32.totalorder %v520, %v719
        %vm744 = vcmp.eq.s32.totalorder %v521, %v715
        %vm745 = vcmp.eq.s32.totalorder %v521, %v719
        %vm746 = vcmp.eq.s32.totalorder %v522, %v715
        %vm747 = vcmp.eq.s32.totalorder %v522, %v719
        %vm748 = vcmp.eq.s32.totalorder %v523, %v715
        %vm749 = vcmp.eq.s32.totalorder %v523, %v719
        %vm750 = vcmp.eq.s32.totalorder %v524, %v715
        %vm751 = vcmp.eq.s32.totalorder %v524, %v719
        %v752 = vsel %vm720, 1, 0
        %v753 = vsel %vm721, 1, 0
        %v754 = vsel %vm722, 1, 0
        %v755 = vsel %vm723, 1, 0
        %v756 = vsel %vm724, 1, 0
        %v757 = vsel %vm725, 1, 0
        %v758 = vsel %vm726, 1, 0
        %v759 = vsel %vm727, 1, 0
        %v760 = vsel %vm728, 1, 0
        %v761 = vsel %vm729, 1, 0
        %v762 = vsel %vm730, 1, 0
        %v763 = vsel %vm731, 1, 0
        %v764 = vsel %vm732, 1, 0
        %v765 = vsel %vm733, 1, 0
        %v766 = vsel %vm734, 1, 0
        %v767 = vsel %vm735, 1, 0
        %v768 = vsel %vm736, 1, 0
        %v769 = vsel %vm737, 1, 0
        %v770 = vsel %vm738, 1, 0
        %v771 = vsel %vm739, 1, 0
        %v772 = vsel %vm740, 1, 0
        %v773 = vsel %vm741, 1, 0
        %v774 = vsel %vm742, 1, 0
        %v775 = vsel %vm743, 1, 0
        %v776 = vsel %vm744, 1, 0
        %v777 = vsel %vm745, 1, 0
        %v778 = vsel %vm746, 1, 0
        %v779 = vsel %vm747, 1, 0
        %v780 = vsel %vm748, 1, 0
        %v781 = vsel %vm749, 1, 0
        %v782 = vsel %vm750, 1, 0
        %v783 = vsel %vm751, 1, 0
        %v784 = vcvt.s32.f32 %v752
        %v785 = vcvt.s32.f32 %v753
        %v786 = vcvt.s32.f32 %v754
        %v787 = vcvt.s32.f32 %v755
        %v788 = vcvt.s32.f32 %v756
        %v789 = vcvt.s32.f32 %v757
        %v790 = vcvt.s32.f32 %v758
        %v791 = vcvt.s32.f32 %v759
        %v792 = vcvt.s32.f32 %v760
        %v793 = vcvt.s32.f32 %v761
        %v794 = vcvt.s32.f32 %v762
        %v795 = vcvt.s32.f32 %v763
        %v796 = vcvt.s32.f32 %v764
        %v797 = vcvt.s32.f32 %v765
        %v798 = vcvt.s32.f32 %v766
        %v799 = vcvt.s32.f32 %v767
        %v800 = vcvt.s32.f32 %v768
        %v801 = vcvt.s32.f32 %v769
        %v802 = vcvt.s32.f32 %v770
        %v803 = vcvt.s32.f32 %v771
        %v804 = vcvt.s32.f32 %v772
        %v805 = vcvt.s32.f32 %v773
        %v806 = vcvt.s32.f32 %v774
        %v807 = vcvt.s32.f32 %v775
        %v808 = vcvt.s32.f32 %v776
        %v809 = vcvt.s32.f32 %v777
        %v810 = vcvt.s32.f32 %v778
        %v811 = vcvt.s32.f32 %v779
        %v812 = vcvt.s32.f32 %v780
        %v813 = vcvt.s32.f32 %v781
        %v814 = vcvt.s32.f32 %v782
        %v815 = vcvt.s32.f32 %v783
        %v816 = vpack.c.bf16 %v786, %v784
        %v817 = vpack.c.bf16 %v787, %v785
        %v818 = vpack.c.bf16 %v790, %v788
        %v819 = vpack.c.bf16 %v791, %v789
        %v820 = vpack.c.bf16 %v794, %v792
        %v821 = vpack.c.bf16 %v795, %v793
        %v822 = vpack.c.bf16 %v798, %v796
        %v823 = vpack.c.bf16 %v799, %v797
        %v824 = vpack.c.bf16 %v802, %v800
        %v825 = vpack.c.bf16 %v803, %v801
        %v826 = vpack.c.bf16 %v806, %v804
        %v827 = vpack.c.bf16 %v807, %v805
        %v828 = vpack.c.bf16 %v810, %v808
        %v829 = vpack.c.bf16 %v811, %v809
        %v830 = vpack.c.bf16 %v814, %v812
        %v831 = vpack.c.bf16 %v815, %v813
        %832 = vmatprep.subr.bf16.mxu0 %v817
        %833 = vmatpush1.bf16.msra.mxu0 %v816
        %834 = vmatprep.subr.bf16.mxu0 %v819
        %835 = vmatpush1.bf16.msra.mxu0 %v818
        %836 = vmatprep.subr.bf16.mxu0 %v821
        %837 = vmatpush1.bf16.msra.mxu0 %v820
        %838 = vmatprep.subr.bf16.mxu0 %v823
        %839 = vmatpush1.bf16.msra.mxu0 %v822
        %840 = vmatprep.subr.bf16.mxu0 %v825
        %841 = vmatpush1.bf16.msra.mxu0 %v824
        %842 = vmatprep.subr.bf16.mxu0 %v827
        %843 = vmatpush1.bf16.msra.mxu0 %v826
        %844 = vmatprep.subr.bf16.mxu0 %v829
        %845 = vmatpush1.bf16.msra.mxu0 %v828
        %846 = vmatprep.subr.bf16.mxu0 %v831
        %847 = vmatpush1.bf16.msra.mxu0 %v830
        %848 = vmatprep.subr.bf16.mxu0 0
        %849 = vmatpush1.bf16.msra.mxu0 0
        %850 = vmatprep.subr.bf16.mxu0 0
        %851 = vmatpush1.bf16.msra.mxu0 0
        %852 = vmatprep.subr.bf16.mxu0 0
        %853 = vmatpush1.bf16.msra.mxu0 0
        %854 = vmatprep.subr.bf16.mxu0 0
        %855 = vmatpush1.bf16.msra.mxu0 0
        %856 = vmatprep.subr.bf16.mxu0 0
        %857 = vmatpush1.bf16.msra.mxu0 0
        %858 = vmatprep.subr.bf16.mxu0 0
        %859 = vmatpush1.bf16.msra.mxu0 0
        %860 = vmatprep.subr.bf16.mxu0 0
        %861 = vmatpush1.bf16.msra.mxu0 0
        %862 = vmatprep.subr.bf16.mxu0 0
        %863 = vmatpush1.bf16.msra.mxu0 0
        %864 = vmatprep.mubr.bf16.mxu0 0
        %865 = vmatmul.mubr.bf16.gmra.mrb[0].mxu0 %v654
        %v866 = vpop.f32.mrb[0].mxu0
        %v867 = vadd.f32 0.0, %v866
        %v868 = vpop.f32.mrb[0].mxu0
        %v869 = vadd.f32 0.0, %v868
        %v870 = vpop.f32.mrb[0].mxu0
        %v871 = vadd.f32 0.0, %v870
        %v872 = vpop.f32.mrb[0].mxu0
        %v873 = vadd.f32 0.0, %v872
        %874 = vmatprep.mubr.bf16.mxu0 0
        %875 = vmatmul.mubr.bf16.gmra.mrb[0].mxu0 %v655
        %v876 = vpop.f32.mrb[0].mxu0
        %v877 = vadd.f32 0.0, %v876
        %v878 = vpop.f32.mrb[0].mxu0
        %v879 = vadd.f32 0.0, %v878
        %v880 = vpop.f32.mrb[0].mxu0
        %v881 = vadd.f32 0.0, %v880
        %v882 = vpop.f32.mrb[0].mxu0
        %v883 = vadd.f32 0.0, %v882
        %884 = vdwg.mxu0
        %v885 = vmul.f32 %v499, %v693
        %v886 = vmul.f32 %v501, %v695
        %v887 = vmul.f32 %v503, %v697
        %v888 = vmul.f32 %v505, %v699
        %v889 = vmul.f32 %v509, %v703
        %v890 = vmul.f32 %v511, %v705
        %v891 = vmul.f32 %v513, %v707
        %v892 = vmul.f32 %v515, %v709
        %v893 = vadd.f32 %v885, %v887
        %v894 = vadd.f32 %v893, %v889
        %v895 = vadd.f32 %v894, %v891
        %v896 = vrot.slane %v895, 4
        %v897 = vadd.f32 %v895, %v896
        %v898 = vrot.slane %v897, 2
        %v899 = vadd.f32 %v897, %v898
        %v900 = vrot.slane %v899, 1
        %v901 = vadd.f32 %v899, %v900
        %v902 = vadd.f32 %v886, %v888
        %v903 = vadd.f32 %v902, %v890
        %v904 = vadd.f32 %v903, %v892
        %v905 = vrot.slane %v904, 4
        %v906 = vadd.f32 %v904, %v905
        %v907 = vrot.slane %v906, 2
        %v908 = vadd.f32 %v906, %v907
        %v909 = vrot.slane %v908, 1
        %v910 = vadd.f32 %v908, %v909
        %v913 = vcombine.low %v901, %v910
        %v915 = vunpack.c.l.s4 1966171168
        %v916 = vunpack.c.0.s8 %v915
        %v917 = vlaneseq
        %v918 = vshrl.u32 %v917, 7
        %v919 = vsub.s32 %v916, %v918
        %v920 = vrot.slane %v913, %v919
        %v922 = vunpack.c.l.s4 1966171168
        %v923 = vunpack.c.0.s8 %v922
        %v924 = vlaneseq
        %v925 = vshrl.u32 %v924, 7
        %v926 = vsub.s32 %v923, %v925
        %v927 = vrot.slane %v920, %v926
        %v929 = vlaneseq
        %vm930 = vcmp.ge.s32.totalorder %v929, 0
        %vm931 = vcmp.lt.s32.totalorder %v929, 256
        %vm932 = vmand %vm930, %vm931
        %933 = vst.msk [vmem:[%s347] sm:$0x3] %vm932, %v927
        %v934 = vmul.f32 %v499, %v867
        %v935 = vmul.f32 %v501, %v869
        %v936 = vmul.f32 %v503, %v871
        %v937 = vmul.f32 %v505, %v873
        %v938 = vmul.f32 %v509, %v877
        %v939 = vmul.f32 %v511, %v879
        %v940 = vmul.f32 %v513, %v881
        %v941 = vmul.f32 %v515, %v883
        %v942 = vadd.f32 %v934, %v936
        %v943 = vadd.f32 %v942, %v938
        %v944 = vadd.f32 %v943, %v940
        %v945 = vrot.slane %v944, 4
        %v946 = vadd.f32 %v944, %v945
        %v947 = vrot.slane %v946, 2
        %v948 = vadd.f32 %v946, %v947
        %v949 = vrot.slane %v948, 1
        %v950 = vadd.f32 %v948, %v949
        %v951 = vadd.f32 %v935, %v937
        %v952 = vadd.f32 %v951, %v939
        %v953 = vadd.f32 %v952, %v941
        %v954 = vrot.slane %v953, 4
        %v955 = vadd.f32 %v953, %v954
        %v956 = vrot.slane %v955, 2
        %v957 = vadd.f32 %v955, %v956
        %v958 = vrot.slane %v957, 1
        %v959 = vadd.f32 %v957, %v958
        %v962 = vcombine.low %v950, %v959
        %v964 = vunpack.c.l.s4 1966171168
        %v965 = vunpack.c.0.s8 %v964
        %v966 = vlaneseq
        %v967 = vshrl.u32 %v966, 7
        %v968 = vsub.s32 %v965, %v967
        %v969 = vrot.slane %v962, %v968
        %v971 = vunpack.c.l.s4 1966171168
        %v972 = vunpack.c.0.s8 %v971
        %v973 = vlaneseq
        %v974 = vshrl.u32 %v973, 7
        %v975 = vsub.s32 %v972, %v974
        %v976 = vrot.slane %v969, %v975
        %978 = vst.msk [vmem:[%s354] sm:$0x3] %vm932, %v976
        %s979 = sand.u32 %s154, 1
        %s980 = scalar_lea.sflag [#allocation4], %s979
        %s981 = sand.u32 %s154, 1
        %s982 = smul.addr %s981, 2
        %s983 = scalar_lea.vmem [#allocation9], %s982
        %s984 = sand.u32 %s180, 1
        %s985 = scalar_lea.sflag [#allocation11], %s984
        %s986 = sand.u32 %s180, 1
        %s987 = smul.addr %s986, 2
        %s988 = scalar_lea.vmem [#allocation10], %s987
        // Predicated region
        $region57: #{tpu_custom_call.1} parent=39 // pred_check
          %p989 = pneg %p164
        $region58: #{tpu_custom_call.1} parent=39 // pred_check_branch
          %991 = sbr.rel (%p989) target = $region60
        $region59: #{tpu_custom_call.1} parent=39 // pred_region
          %s992 = smul.u32 2, %s26
          %s994 = ssub.s32 32, 32
          %995 = vsyncadd %s980, %s994
          %s996 = smul.addr %s992, 16
          %s997 = scalar_lea.hbm %s5, %s996
          %s999 = sshll.u32 %s983, 4
          %s1000 = int_to_ptr.vmem [resolvable:$true] %s999
          %1002 = dma.vmem_to_hbm [thread:$0]  %s1000, 32, %s997, %s980
        $region60: #{tpu_custom_call.1} parent=39 // pred_fallthru
          _
        // Predicated region
        $region61: #{tpu_custom_call.1} parent=39 // pred_check
          %p1003 = pneg %p190
        $region62: #{tpu_custom_call.1} parent=39 // pred_check_branch
          %1005 = sbr.rel (%p1003) target = $region64
        $region63: #{tpu_custom_call.1} parent=39 // pred_region
          %s1006 = smul.u32 2, %s26
          %s1008 = ssub.s32 32, 32
          %1009 = vsyncadd %s985, %s1008
          %s1010 = smul.addr %s1006, 16
          %s1011 = scalar_lea.hbm %s6, %s1010
          %s1013 = sshll.u32 %s988, 4
          %s1014 = int_to_ptr.vmem [resolvable:$true] %s1013
          %1016 = dma.vmem_to_hbm [thread:$0]  %s1014, 32, %s1011, %s985
        $region64: #{tpu_custom_call.1} parent=39 // pred_fallthru
          _
      $region40: #{tpu_custom_call.1} parent=5 // pred_fallthru
        _
      %p1017 = scmp.le.s32.totalorder 2, %s21
      // Predicated region
      $region65: #{tpu_custom_call.1} parent=5 // pred_check
        %p1018 = pneg %p1017
      $region66: #{tpu_custom_call.1} parent=5 // pred_check_branch
        %1020 = sbr.rel (%p1018) target = $region68
      $region67: #{tpu_custom_call.1} parent=5 // pred_region
        %s1021 = ssub.s32 %s21, 2
        // Predicated region
        $region69: #{tpu_custom_call.1} parent=67 // pred_check
          %p1022 = pneg %p170
        $region70: #{tpu_custom_call.1} parent=67 // pred_check_branch
          %1024 = sbr.rel (%p1022) target = $region72
        $region71: #{tpu_custom_call.1} parent=67 // pred_region
          %s1025 = sand.u32 %s155, 1
          %s1026 = scalar_lea.sflag [#allocation4], %s1025
          %s1027 = sand.u32 %s155, 1
          %s1028 = smul.addr %s1027, 2
          %s1029 = scalar_lea.vmem [#allocation9], %s1028
          %1030 = dma.done %s1026, 32
        $region72: #{tpu_custom_call.1} parent=67 // pred_fallthru
          _
        // Predicated region
        $region73: #{tpu_custom_call.1} parent=67 // pred_check
          %p1031 = pneg %p196
        $region74: #{tpu_custom_call.1} parent=67 // pred_check_branch
          %1033 = sbr.rel (%p1031) target = $region76
        $region75: #{tpu_custom_call.1} parent=67 // pred_region
          %s1034 = sand.u32 %s181, 1
          %s1035 = scalar_lea.sflag [#allocation11], %s1034
          %s1036 = sand.u32 %s181, 1
          %s1037 = smul.addr %s1036, 2
          %s1038 = scalar_lea.vmem [#allocation10], %s1037
          %1039 = dma.done %s1035, 32
        $region76: #{tpu_custom_call.1} parent=67 // pred_fallthru
          _
      $region68: #{tpu_custom_call.1} parent=5 // pred_fallthru
        _
    $region6: #{tpu_custom_call.1} parent=1 // loop_footer
      %s25 = sadd.s32 1, %s21
    $region7: #{tpu_custom_call.1} parent=1 // loop_footer_branch
      %20 = sbr.rel target = $region3
    $region8: #{tpu_custom_call.1} parent=1 // loop_exit
      _
    %1040 = vsyncpa [#allocation3], 1
    %s1041 = scalar_lea.sflag [#allocation3], 1
    %1042 = vsyncpa %s1041, 1
    %1043 = vsyncpa [#allocation6], 1
    %1044 = vsyncpa [#allocation4], 1
    %s1045 = scalar_lea.sflag [#allocation4], 1
    %1046 = vsyncpa %s1045, 1
    %1047 = vsyncpa [#allocation11], 1
    %s1048 = scalar_lea.sflag [#allocation11], 1
    %1049 = vsyncpa %s1048, 1

</llo_original>
